<compile_context>
chip_gen: v7x
topology: tpu7x:2x2x1
jax: 0.10.0
libtpu: 0.0.40
codegen_flags: <defaults>
</compile_context>

<pallas_src>
import jax
import jax.numpy as jnp
from jax import lax
from jax.experimental import pallas as pl
from jax.experimental.pallas import tpu as pltpu

MARGIN = 1.0
EPS = 1e-6  # torch F.pairwise_distance default eps


def _round_up(x, m):
    return ((x + m - 1) // m) * m


def _vmem_capacity_bytes():
    try:
        info = pltpu.get_tpu_info()
        cap = getattr(info, "vmem_capacity_bytes", None)
        if cap:
            return int(cap)
    except Exception:
        pass
    return 64 * 1024 * 1024  # conservative (v7x-sized) fallback


def _choose_tb(B, D, itemsize, vmem_cap):
    """Batch (sublane) tile size, sized by VMEM footprint of one (tb, D) buffer."""
    # ~8 MiB/buffer on 128 MiB chips (v5e/v6e), ~4 MiB/buffer on 64 MiB v7x.
    per_buf = max(2 << 20, min(8 << 20, vmem_cap // 16))
    d_pad = _round_up(D, 128)  # minor dim is lane-padded to 128 in VMEM
    tb = max(1, per_buf // (d_pad * itemsize))
    if tb >= B:
        return B  # one full-B block (full dim is always a legal block size)
    return max(8, (tb // 8) * 8)  # sublane axis: multiple of 8


def _make_kernel(true_b, tb, tiles_per_core, margin, eps):
    inv_b = 1.0 / float(true_b)
    margin = float(margin)
    eps = float(eps)

    def kernel(o1_ref, o2_ref, lbl_ref, out_ref, acc_ref):
        c = pl.program_id(0)                 # core-split ("parallel") axis
        t = pl.program_id(1)                 # tile stream ("arbitrary") axis
        tile_idx = c * tiles_per_core + t    # un-clamped global tile index

        @pl.when(t == 0)
        def _init():
            acc_ref[...] = jnp.zeros_like(acc_ref)

        # Native-dtype stream; cast to f32 after load.
        o1 = o1_ref[...].astype(jnp.float32)          # (tb, D)
        o2 = o2_ref[...].astype(jnp.float32)          # (tb, D)
        lbl = lbl_ref[...].astype(jnp.float32)        # (tb, 1)

        diff = o1 - o2 + eps                          # torch adds eps to the difference
        sq = jnp.sum(diff * diff, axis=-1, keepdims=True)   # (tb, 1) squared distance
        # sqrt via EUP rsqrt (otherwise-idle slot); guard exact zero so 0*inf -> NaN can't appear.
        dist = sq * lax.rsqrt(jnp.maximum(sq, jnp.float32(1e-36)))
        hinge = jnp.maximum(margin - dist, 0.0)
        per_row = (1.0 - lbl) * sq + lbl * (hinge * hinge)   # (tb, 1)

        full_tile = (tile_idx * tb + tb) <= true_b

        @pl.when(full_tile)
        def _acc_full():
            acc_ref[...] += per_row

        @pl.when(jnp.logical_not(full_tile))
        def _acc_masked():
            # Partial / duplicated tiles: zero rows past the true batch size
            # (select-based, so unspecified OOB block contents cannot leak).
            rows = tile_idx * tb + lax.broadcasted_iota(jnp.int32, per_row.shape, 0)
            acc_ref[...] += jnp.where(rows < true_b, per_row, 0.0)

        @pl.when(t == tiles_per_core - 1)
        def _finalize():
            partial = jnp.sum(acc_ref[...]) * inv_b   # this core's share of the mean
            out_ref[...] = jnp.zeros_like(out_ref) + partial  # lane-dense (8,128) splat

    return kernel


def contrastive_loss(output1, output2, label, *, margin=MARGIN, eps=EPS, tb_override=None):
    """output1, output2: (B, D); label: (B,) of 0/1. Returns scalar f32 loss."""
    B, D = output1.shape
    itemsize = jnp.dtype(output1.dtype).itemsize
    vmem_cap = _vmem_capacity_bytes()
    tb = tb_override if tb_override is not None else _choose_tb(B, D, itemsize, vmem_cap)

    num_tiles = pl.cdiv(B, tb)
    # Split the tile stream across TensorCores (2 on v7x; harmless on 1-TC chips).
    # TODO(synk): query the actual per-chip TensorCore count instead of always using 2.
    nc = 2 if num_tiles >= 2 else 1
    tiles_per_core = pl.cdiv(num_tiles, nc)

    lbl2d = label.reshape(B, 1)  # native dtype; cast in-kernel

    def data_map(c, t):
        # Clamp duplicated trailing tiles (when num_tiles % nc != 0) to the last
        # real block; the in-kernel row mask zeroes their contribution.
        return (jnp.minimum(c * tiles_per_core + t, num_tiles - 1), 0)

    out = pl.pallas_call(
        _make_kernel(B, tb, tiles_per_core, margin, eps),
        out_shape=jax.ShapeDtypeStruct((nc * 8, 128), jnp.float32),
        grid=(nc, tiles_per_core),
        in_specs=[
            pl.BlockSpec((tb, D), data_map),
            pl.BlockSpec((tb, D), data_map),
            pl.BlockSpec((tb, 1), data_map),
        ],
        out_specs=pl.BlockSpec((8, 128), lambda c, t: (c, 0)),
        scratch_shapes=[pltpu.VMEM((tb, 1), jnp.float32)],
        compiler_params=pltpu.CompilerParams(
            dimension_semantics=("parallel", "arbitrary"),
            vmem_limit_bytes=int(vmem_cap * 3 // 4),
        ),
    )(output1, output2, lbl2d)

    partials = out[0::8, 0]          # one partial mean per core
    return jnp.sum(partials)


def _reference(output1, output2, label, margin=MARGIN, eps=EPS):
    # Pure-JAX reference mirroring the torch module.
    d = jnp.sqrt(jnp.sum((output1 - output2 + eps) ** 2, axis=-1))
    return jnp.mean((1.0 - label) * d**2 + label * jnp.maximum(margin - d, 0.0) ** 2)


if __name__ == "__main__":
    key = jax.random.PRNGKey(0)
    k1, k2, k3, k4, k5, k6 = jax.random.split(key, 6)

    # Case 1: small embedding batch (single full tile), f32.
    B, D = 8, 32
    o1 = jax.random.normal(k1, (B, D), dtype=jnp.float32)
    o2 = jax.random.normal(k2, (B, D), dtype=jnp.float32)
    lbl = jax.random.bernoulli(k3, 0.5, (B,)).astype(jnp.float32)

    loss = contrastive_loss(o1, o2, lbl)
    jax.block_until_ready(loss)
    ref = _reference(o1, o2, lbl)
    assert jnp.allclose(loss, ref, rtol=1e-5, atol=1e-5), (loss, ref)

    # Case 2: exercises the multi-tile grid, the 2-way core split, partial-tile
    # masking and native-bf16 streaming (tile size forced small on purpose).
    B2, D2 = 100, 64
    o1b = jax.random.normal(k4, (B2, D2), dtype=jnp.bfloat16)
    o2b = jax.random.normal(k5, (B2, D2), dtype=jnp.bfloat16)
    lblb = jax.random.bernoulli(k6, 0.5, (B2,)).astype(jnp.float32)

    loss2 = contrastive_loss(o1b, o2b, lblb, tb_override=16)
    jax.block_until_ready(loss2)
    ref2 = _reference(o1b.astype(jnp.float32), o2b.astype(jnp.float32), lblb)
    assert jnp.allclose(loss2, ref2, rtol=1e-4, atol=1e-4), (loss2, ref2)

    print("KERNEL_OK")
</pallas_src>

<mosaic_0001>
module attributes {stable_mosaic.version = 11 : i64} {
  func.func @kernel(%arg0: i32, %arg1: i32, %arg2: memref<8x32xf32, #tpu.memory_space<vmem>>, %arg3: memref<8x32xf32, #tpu.memory_space<vmem>>, %arg4: memref<8x1xf32, #tpu.memory_space<vmem>>, %arg5: memref<8x128xf32, #tpu.memory_space<vmem>>, %arg6: memref<8x1xf32, #tpu.memory_space<vmem>>) attributes {dimension_semantics = [#tpu.dimension_semantics<parallel>, #tpu.dimension_semantics<arbitrary>], iteration_bounds = array<i64: 1, 1>, scalar_prefetch = 0 : i64, scratch_operands = 1 : i64, tpu.core_type = #tpu.core_type<tc>, window_params = [{transform_indices = @transform_0, window_bounds = array<i64: 8, 32>}, {transform_indices = @transform_1, window_bounds = array<i64: 8, 32>}, {transform_indices = @transform_2, window_bounds = array<i64: 8, 1>}, {transform_indices = @transform_3, window_bounds = array<i64: 8, 128>}]} {
    %c1_i32 = arith.constant 1 : i32
    %0 = arith.muli %arg0, %c1_i32 : i32
    %1 = arith.addi %0, %arg1 : i32
    %c0_i32 = arith.constant 0 : i32
    %2 = arith.cmpi eq, %arg1, %c0_i32 : i32
    %3 = arith.extui %2 : i1 to i32
    %c0_i32_0 = arith.constant 0 : i32
    %4 = arith.cmpi ne, %3, %c0_i32_0 : i32
    scf.if %4 {
      %cst_17 = arith.constant 0.000000e+00 : f32
      %39 = vector.broadcast %cst_17 : f32 to vector<8x1xf32>
      %c0_18 = arith.constant 0 : index
      %c0_19 = arith.constant 0 : index
      %40 = vector.load %arg6[%c0_18, %c0_19] : memref<8x1xf32, #tpu.memory_space<vmem>>, vector<8x1xf32>
      tpu.vector_store %arg6[%c0_18, %c0_19], %39 {strides = array<i32>} : memref<8x1xf32, #tpu.memory_space<vmem>>, vector<8x1xf32>,
    } else {
    }
    %c0 = arith.constant 0 : index
    %c0_1 = arith.constant 0 : index
    %5 = vector.load %arg2[%c0, %c0_1] : memref<8x32xf32, #tpu.memory_space<vmem>>, vector<8x32xf32>
    %c0_2 = arith.constant 0 : index
    %c0_3 = arith.constant 0 : index
    %6 = vector.load %arg3[%c0_2, %c0_3] : memref<8x32xf32, #tpu.memory_space<vmem>>, vector<8x32xf32>
    %c0_4 = arith.constant 0 : index
    %c0_5 = arith.constant 0 : index
    %7 = vector.load %arg4[%c0_4, %c0_5] : memref<8x1xf32, #tpu.memory_space<vmem>>, vector<8x1xf32>
    %8 = arith.subf %5, %6 : vector<8x32xf32>
    %cst = arith.constant 9.99999997E-7 : f32
    %9 = vector.broadcast %cst : f32 to vector<8x32xf32>
    %10 = arith.addf %8, %9 : vector<8x32xf32>
    %11 = arith.mulf %10, %10 : vector<8x32xf32>
    %cst_6 = arith.constant dense<0.000000e+00> : vector<8xf32>
    %12 = vector.multi_reduction <add>, %11, %cst_6 [1] : vector<8x32xf32> to vector<8xf32>
    %13 = vector.shape_cast %12 : vector<8xf32> to vector<8x1xf32>
    %cst_7 = arith.constant 1.000000e-36 : f32
    %14 = vector.broadcast %cst_7 : f32 to vector<8x1xf32>
    %15 = arith.maximumf %13, %14 : vector<8x1xf32>
    %16 = math.rsqrt %15 : vector<8x1xf32>
    %17 = arith.mulf %13, %16 : vector<8x1xf32>
    %cst_8 = arith.constant 1.000000e+00 : f32
    %18 = vector.broadcast %cst_8 : f32 to vector<8x1xf32>
    %19 = arith.subf %18, %17 : vector<8x1xf32>
    %cst_9 = arith.constant 0.000000e+00 : f32
    %20 = vector.broadcast %cst_9 : f32 to vector<8x1xf32>
    %21 = arith.maximumf %19, %20 : vector<8x1xf32>
    %cst_10 = arith.constant 1.000000e+00 : f32
    %22 = vector.broadcast %cst_10 : f32 to vector<8x1xf32>
    %23 = arith.subf %22, %7 : vector<8x1xf32>
    %24 = arith.mulf %23, %13 : vector<8x1xf32>
    %25 = arith.mulf %21, %21 : vector<8x1xf32>
    %26 = arith.mulf %7, %25 : vector<8x1xf32>
    %27 = arith.addf %24, %26 : vector<8x1xf32>
    %c8_i32 = arith.constant 8 : i32
    %28 = arith.muli %1, %c8_i32 : i32
    %c8_i32_11 = arith.constant 8 : i32
    %29 = arith.addi %28, %c8_i32_11 : i32
    %c8_i32_12 = arith.constant 8 : i32
    %30 = arith.cmpi sle, %29, %c8_i32_12 : i32
    %31 = arith.extui %30 : i1 to i32
    %c0_i32_13 = arith.constant 0 : i32
    %32 = arith.cmpi ne, %31, %c0_i32_13 : i32
    scf.if %32 {
      %c0_17 = arith.constant 0 : index
      %c0_18 = arith.constant 0 : index
      %39 = vector.load %arg6[%c0_17, %c0_18] : memref<8x1xf32, #tpu.memory_space<vmem>>, vector<8x1xf32>
      %40 = arith.addf %39, %27 : vector<8x1xf32>
      %c0_19 = arith.constant 0 : index
      %c0_20 = arith.constant 0 : index
      %41 = vector.load %arg6[%c0_19, %c0_20] : memref<8x1xf32, #tpu.memory_space<vmem>>, vector<8x1xf32>
      tpu.vector_store %arg6[%c0_19, %c0_20], %40 {strides = array<i32>} : memref<8x1xf32, #tpu.memory_space<vmem>>, vector<8x1xf32>,
    } else {
    }
    %true = arith.constant true
    %33 = arith.xori %30, %true : i1
    %34 = arith.extui %33 : i1 to i32
    %c0_i32_14 = arith.constant 0 : i32
    %35 = arith.cmpi ne, %34, %c0_i32_14 : i32
    scf.if %35 {
      %c8_i32_17 = arith.constant 8 : i32
      %39 = arith.muli %1, %c8_i32_17 : i32
      %40 = tpu.iota {dimensions = array<i32: 0>} : vector<8x1xi32>
      %41 = vector.broadcast %39 : i32 to vector<8x1xi32>
      %42 = arith.addi %41, %40 : vector<8x1xi32>
      %c0_18 = arith.constant 0 : index
      %c0_19 = arith.constant 0 : index
      %43 = vector.load %arg6[%c0_18, %c0_19] : memref<8x1xf32, #tpu.memory_space<vmem>>, vector<8x1xf32>
      %c8_i32_20 = arith.constant 8 : i32
      %44 = vector.broadcast %c8_i32_20 : i32 to vector<8x1xi32>
      %45 = arith.cmpi slt, %42, %44 : vector<8x1xi32>
      %cst_21 = arith.constant 0.000000e+00 : f32
      %46 = vector.broadcast %cst_21 : f32 to vector<8x1xf32>
      %47 = arith.select %45, %27, %46 : vector<8x1xi1>, vector<8x1xf32>
      %48 = arith.addf %43, %47 : vector<8x1xf32>
      %c0_22 = arith.constant 0 : index
      %c0_23 = arith.constant 0 : index
      %49 = vector.load %arg6[%c0_22, %c0_23] : memref<8x1xf32, #tpu.memory_space<vmem>>, vector<8x1xf32>
      tpu.vector_store %arg6[%c0_22, %c0_23], %48 {strides = array<i32>} : memref<8x1xf32, #tpu.memory_space<vmem>>, vector<8x1xf32>,
    } else {
    }
    %c0_i32_15 = arith.constant 0 : i32
    %36 = arith.cmpi eq, %arg1, %c0_i32_15 : i32
    %37 = arith.extui %36 : i1 to i32
    %c0_i32_16 = arith.constant 0 : i32
    %38 = arith.cmpi ne, %37, %c0_i32_16 : i32
    scf.if %38 {
      %c0_17 = arith.constant 0 : index
      %c0_18 = arith.constant 0 : index
      %39 = vector.load %arg6[%c0_17, %c0_18] : memref<8x1xf32, #tpu.memory_space<vmem>>, vector<8x1xf32>
      %40 = vector.shape_cast %39 : vector<8x1xf32> to vector<1x8x1xf32>
      %cst_19 = arith.constant dense<0.000000e+00> : vector<1xf32>
      %41 = vector.multi_reduction <add>, %40, %cst_19 [1, 2] : vector<1x8x1xf32> to vector<1xf32>
      %42 = vector.shape_cast %41 : vector<1xf32> to vector<1x1x1xf32>
      %43 = vector.extract %42[0, 0, 0] : f32 from vector<1x1x1xf32>
      %cst_20 = arith.constant 1.250000e-01 : f32
      %44 = arith.mulf %43, %cst_20 : f32
      %cst_21 = arith.constant 0.000000e+00 : f32
      %45 = vector.broadcast %cst_21 : f32 to vector<8x128xf32>
      %46 = vector.broadcast %44 : f32 to vector<8x128xf32>
      %47 = arith.addf %45, %46 : vector<8x128xf32>
      %c0_22 = arith.constant 0 : index
      %c0_23 = arith.constant 0 : index
      %48 = vector.load %arg5[%c0_22, %c0_23] : memref<8x128xf32, #tpu.memory_space<vmem>>, vector<8x128xf32>
      tpu.vector_store %arg5[%c0_22, %c0_23], %47 {strides = array<i32>} : memref<8x128xf32, #tpu.memory_space<vmem>>, vector<8x128xf32>,
    } else {
    }
    return
  }
  func.func @transform_0(%arg0: i32, %arg1: i32) -> (i32, i32) {
    %c1_i32 = arith.constant 1 : i32
    %0 = arith.muli %arg0, %c1_i32 : i32
    %1 = arith.addi %0, %arg1 : i32
    %c0_i32 = arith.constant 0 : i32
    %2 = arith.minsi %1, %c0_i32 : i32
    %c0_i32_0 = arith.constant 0 : i32
    %c0_i32_1 = arith.constant 0 : i32
    return %2, %c0_i32_0 : i32, i32
  }
  func.func @transform_1(%arg0: i32, %arg1: i32) -> (i32, i32) {
    %c1_i32 = arith.constant 1 : i32
    %0 = arith.muli %arg0, %c1_i32 : i32
    %1 = arith.addi %0, %arg1 : i32
    %c0_i32 = arith.constant 0 : i32
    %2 = arith.minsi %1, %c0_i32 : i32
    %c0_i32_0 = arith.constant 0 : i32
    %c0_i32_1 = arith.constant 0 : i32
    return %2, %c0_i32_0 : i32, i32
  }
  func.func @transform_2(%arg0: i32, %arg1: i32) -> (i32, i32) {
    %c1_i32 = arith.constant 1 : i32
    %0 = arith.muli %arg0, %c1_i32 : i32
    %1 = arith.addi %0, %arg1 : i32
    %c0_i32 = arith.constant 0 : i32
    %2 = arith.minsi %1, %c0_i32 : i32
    %c0_i32_0 = arith.constant 0 : i32
    %c0_i32_1 = arith.constant 0 : i32
    return %2, %c0_i32_0 : i32, i32
  }
  func.func @transform_3(%arg0: i32, %arg1: i32) -> (i32, i32) {
    %c0_i32 = arith.constant 0 : i32
    %c0_i32_0 = arith.constant 0 : i32
    return %arg0, %c0_i32 : i32, i32
  }
}

</mosaic_0001>

<llo_original>
// kernel: tpu_custom_call.1
$region0: #{tpu_custom_call.1}
  #allocation0 [shape = 'u32[]', space=smem, size = 0x4, offset = 0x4, fixed_abs, tag = 'smem constant byte address 0x4 - core index']
  #allocation1 [shape = 'u32[144,128]{1,0:T(1,128)}', space=vmem, size = 0x12000, scoped, tag = 'internal scratch']
  #allocation2 [shape = 'f32[8,1]{1,0:T(8,128)}', space=vmem, size = 0x1000, scoped, tag = 'scratch operand']
  %s0 = inlined_call_operand.vmem [shape: f32[8,32], index: 0, kind: input, shape index: {}]
  %s1 = inlined_call_operand.hbm [shape: f32[8,32], index: 1, kind: input, shape index: {}]
  %s2 = inlined_call_operand.vmem [shape: f32[8,1], index: 2, kind: input, shape index: {}]
  %s3 = inlined_call_operand.hbm [shape: f32[8,128], index: 3, kind: output, shape index: {}]
  %s4 = sld [smem:[#allocation0]]
  $region42: #{tpu_custom_call.1} parent=0
    _
  %s6 = ssub.s32 1, %s4
  %s7 = scalar_select 0, %s6, %s4
  $region1: #{tpu_custom_call.1} parent=0
    #allocation3 [shape = 'u8[4096]{0}', space=vmem, size = 0x1000, scoped, tag = 'input window, operand 1, single buffered']
    #allocation4 [shape = 's32[1]{0}', space=sflag, size = 0x4, scoped, tag = 'scoped memory for tpu_custom_call.1']
    #allocation5 [shape = 's32[1]{0}', space=sflag, size = 0x4, scoped, tag = 'scoped memory for tpu_custom_call.1']
    #allocation6 [shape = 'u8[4096]{0}', space=vmem, size = 0x1000, scoped, tag = 'output window, operand 0, single buffered']
    %8 = vsyncpa [#allocation4], 0
    %9 = vsyncpa [#allocation5], 0
    // Predicated region
    $region2: #{tpu_custom_call.1} parent=1 // pred_check
      _
    $region3: #{tpu_custom_call.1} parent=1 // pred_check_branch
      %11 = sbr.rel (0) target = $region5
    $region4: #{tpu_custom_call.1} parent=1 // pred_region
      %s12 = sadd.s32 0, 0
      %p13 = scmp.lt.s32.totalorder %s12, 0
      %s14 = scalar_select %p13, %s12, 0
      %p15 = scmp.lt.s32.totalorder %s14, 0
      %s16 = scalar_select %p15, %s14, 0
      %s17 = smul.addr %s16, 8
      %s18 = scalar_lea.vmem %s0, %s17
      %s19 = sadd.s32 0, 0
      %p20 = scmp.lt.s32.totalorder %s19, 0
      %s21 = scalar_select %p20, %s19, 0
    $region5: #{tpu_custom_call.1} parent=1 // pred_fallthru
      _
    // Predicated region
    $region6: #{tpu_custom_call.1} parent=1 // pred_check
      _
    $region7: #{tpu_custom_call.1} parent=1 // pred_check_branch
      %23 = sbr.rel (0) target = $region9
    $region8: #{tpu_custom_call.1} parent=1 // pred_region
      %s24 = sadd.s32 0, 0
      %p25 = scmp.lt.s32.totalorder %s24, 0
      %s26 = scalar_select %p25, %s24, 0
      %s28 = ssub.s32 128, 128
      %29 = vsyncadd [#allocation4], %s28
      %s30 = smul.addr %s26, 128
      %s31 = scalar_lea.hbm %s1, %s30
      %s33 = sshll.u32 [#allocation3], 4
      %s34 = int_to_ptr.vmem [resolvable:$true] %s33
      %36 = dma.hbm_to_vmem [thread:$0]  %s31, 128, %s34, [#allocation4]
    $region9: #{tpu_custom_call.1} parent=1 // pred_fallthru
      _
    // Predicated region
    $region10: #{tpu_custom_call.1} parent=1 // pred_check
      _
    $region11: #{tpu_custom_call.1} parent=1 // pred_check_branch
      %38 = sbr.rel (0) target = $region13
    $region12: #{tpu_custom_call.1} parent=1 // pred_region
      %s39 = sadd.s32 0, 0
      %p40 = scmp.lt.s32.totalorder %s39, 0
      %s41 = scalar_select %p40, %s39, 0
      %p42 = scmp.lt.s32.totalorder %s41, 0
      %s43 = scalar_select %p42, %s41, 0
      %s44 = smul.addr %s43, 8
      %s45 = scalar_lea.vmem %s2, %s44
      %s46 = sadd.s32 0, 0
      %p47 = scmp.lt.s32.totalorder %s46, 0
      %s48 = scalar_select %p47, %s46, 0
    $region13: #{tpu_custom_call.1} parent=1 // pred_fallthru
      _
    // Predicated region
    $region14: #{tpu_custom_call.1} parent=1 // pred_check
      _
    $region15: #{tpu_custom_call.1} parent=1 // pred_check_branch
      %50 = sbr.rel (0) target = $region17
    $region16: #{tpu_custom_call.1} parent=1 // pred_region
      %51 = dma.done [#allocation4], 128
    $region17: #{tpu_custom_call.1} parent=1 // pred_fallthru
      _
    %s52 = sadd.s32 0, 0
    %p53 = scmp.lt.s32.totalorder %s52, 0
    %s54 = scalar_select %p53, %s52, 0
    %p55 = scmp.lt.s32.totalorder %s54, 0
    %s56 = scalar_select %p55, %s54, 0
    %s57 = smul.addr %s56, 8
    %s58 = scalar_lea.vmem %s0, %s57
    %s59 = sadd.s32 0, 0
    %p60 = scmp.lt.s32.totalorder %s59, 0
    %s61 = scalar_select %p60, %s59, 0
    %p62 = scmp.lt.s32.totalorder %s61, 0
    %s63 = scalar_select %p62, %s61, 0
    %s64 = smul.addr %s63, 8
    %s65 = scalar_lea.vmem %s2, %s64
    %s66 = sadd.s32 0, 0
    %p67 = scmp.lt.s32.totalorder %s66, 0
    %s68 = scalar_select %p67, %s66, 0
    %p69 = scmp.lt.s32.totalorder %s68, 0
    %s70 = scalar_select %p69, %s68, 0
    %s71 = smul.addr %s70, 8
    %s72 = scalar_lea.vmem %s0, %s71
    %s73 = sadd.s32 0, 0
    %p74 = scmp.lt.s32.totalorder %s73, 0
    %s75 = scalar_select %p74, %s73, 0
    %s76 = sadd.s32 0, 0
    %p77 = scmp.lt.s32.totalorder %s76, 0
    %s78 = scalar_select %p77, %s76, 0
    %s79 = sadd.s32 0, 0
    %p80 = scmp.lt.s32.totalorder %s79, 0
    %s81 = scalar_select %p80, %s79, 0
    %p82 = scmp.lt.s32.totalorder %s81, 0
    %s83 = scalar_select %p82, %s81, 0
    %s84 = smul.addr %s83, 8
    %s85 = scalar_lea.vmem %s2, %s84
    %s86 = sadd.s32 0, 0
    %p87 = scmp.lt.s32.totalorder %s86, 0
    %s88 = scalar_select %p87, %s86, 0
    %s89 = sadd.s32 0, 0
    %p90 = scmp.eq.s32.totalorder 0, 0
    // Predicated region
    $region18: #{tpu_custom_call.1} parent=1 // pred_check
      %p91 = pneg %p90
    $region19: #{tpu_custom_call.1} parent=1 // pred_check_branch
      %93 = sbr.rel (%p91) target = $region21
    $region20: #{tpu_custom_call.1} parent=1 // pred_region
      %vm94 = vcmask 7168
      %95 = vst.msk [vmem:[#allocation2] sm:$0xff] %vm94, 0.0
    $region21: #{tpu_custom_call.1} parent=1 // pred_fallthru
      _
    %v96 = vld [vmem:[%s72] sm:$0xff]
    %v97 = vld [vmem:[#allocation3] sm:$0xff]
    %v98 = vld [vmem:[%s85] sm:$0xff]
    %v99 = vsub.f32 %v96, %v97
    %v100 = vadd.f32 %v99, 1e-06
    %v101 = vmul.f32 %v100, %v100
    %vm102 = vcmask 261120
    %v103 = vsel %vm102, %v101, 0.0
    %104 = vadd.xlane.f32.xlu0 %v103
    %v105 = vpop.xlane.xlu0 %104
    %v106 = vmax.f32 %v105, 1e-36
    %v107 = vrsqrt.pop %v106
    %v108 = vmul.f32 %v105, %v107
    %v109 = vsub.f32 1.0, %v108
    %v110 = vmax.f32 %v109, 0.0
    %v111 = vsub.f32 1.0, %v98
    %v112 = vmul.f32 %v111, %v105
    %v113 = vmul.f32 %v110, %v110
    %v114 = vmul.f32 %v98, %v113
    %v115 = vadd.f32 %v112, %v114
    %s116 = smul.u32 %s89, 8
    %s117 = sadd.s32 %s116, 8
    %p118 = scmp.le.s32.totalorder %s117, 8
    // Predicated region
    $region22: #{tpu_custom_call.1} parent=1 // pred_check
      %p119 = pneg %p118
    $region23: #{tpu_custom_call.1} parent=1 // pred_check_branch
      %121 = sbr.rel (%p119) target = $region25
    $region24: #{tpu_custom_call.1} parent=1 // pred_region
      %v122 = vld [vmem:[#allocation2] sm:$0xff]
      %v123 = vadd.f32 %v122, %v115
      %vm124 = vcmask 7168
      %125 = vst.msk [vmem:[#allocation2] sm:$0xff] %vm124, %v123
    $region25: #{tpu_custom_call.1} parent=1 // pred_fallthru
      _
    %p126 = scmp.gt.s32.totalorder %s117, 8
    // Predicated region
    $region26: #{tpu_custom_call.1} parent=1 // pred_check
      %p127 = pneg %p126
    $region27: #{tpu_custom_call.1} parent=1 // pred_check_branch
      %129 = sbr.rel (%p127) target = $region29
    $region28: #{tpu_custom_call.1} parent=1 // pred_region
      %v130 = vlaneseq
      %v131 = vshrl.u32 %v130, 7
      %v132 = vstv %s116
      %v133 = vadd.s32 %v132, %v131
      %v134 = vld [vmem:[#allocation2] sm:$0xff]
      %vm135 = vcmp.lt.s32.totalorder %v133, 8
      %v136 = vsel %vm135, %v115, 0.0
      %v137 = vadd.f32 %v134, %v136
      %vm138 = vcmask 7168
      %139 = vst.msk [vmem:[#allocation2] sm:$0xff] %vm138, %v137
    $region29: #{tpu_custom_call.1} parent=1 // pred_fallthru
      _
    // Predicated region
    $region30: #{tpu_custom_call.1} parent=1 // pred_check
      %p140 = pneg %p90
    $region31: #{tpu_custom_call.1} parent=1 // pred_check_branch
      %142 = sbr.rel (%p140) target = $region33
    $region32: #{tpu_custom_call.1} parent=1 // pred_region
      %v143 = vld [vmem:[#allocation2] sm:$0xff]
      %vm144 = vcmask 7168
      %v145 = vsel %vm144, %v143, 0.0
      %146 = vadd.xlane.f32.xlu0 %v145
      %v147 = vpop.xlane.xlu0 %146
      %v148 = vrot.slane %v147, 4
      %v149 = vadd.f32 %v147, %v148
      %v150 = vrot.slane %v149, 2
      %v151 = vadd.f32 %v149, %v150
      %v152 = vrot.slane %v151, 1
      %v153 = vadd.f32 %v151, %v152
      %s154 = vtos %v153
      %s155 = smul.f32 %s154, 0.125
      %v156 = vstv %s155
      %v157 = vadd.f32 %v156, 0.0
      %158 = vst [vmem:[#allocation6] sm:$0xff] %v157
    $region33: #{tpu_custom_call.1} parent=1 // pred_fallthru
      _
    // Predicated region
    $region34: #{tpu_custom_call.1} parent=1 // pred_check
      _
    $region35: #{tpu_custom_call.1} parent=1 // pred_check_branch
      %160 = sbr.rel (0) target = $region37
    $region36: #{tpu_custom_call.1} parent=1 // pred_region
      %s162 = ssub.s32 128, 128
      %163 = vsyncadd [#allocation5], %s162
      %s165 = sshll.u32 [#allocation6], 4
      %s166 = int_to_ptr.vmem [resolvable:$true] %s165
      %168 = dma.vmem_to_hbm [thread:$0]  %s166, 128, %s3, [#allocation5]
    $region37: #{tpu_custom_call.1} parent=1 // pred_fallthru
      _
    // Predicated region
    $region38: #{tpu_custom_call.1} parent=1 // pred_check
      _
    $region39: #{tpu_custom_call.1} parent=1 // pred_check_branch
      %170 = sbr.rel (0) target = $region41
    $region40: #{tpu_custom_call.1} parent=1 // pred_region
      %171 = dma.done [#allocation5], 128
    $region41: #{tpu_custom_call.1} parent=1 // pred_fallthru
      _
    %172 = vsyncpa [#allocation4], 1
    %173 = vsyncpa [#allocation5], 1

</llo_original>
